<compile_context>
chip_gen: v7x
topology: tpu7x:2x2x1
jax: 0.10.0
libtpu: 0.0.40
codegen_flags: <defaults>
</compile_context>

<pallas_src>
import functools
import math

import jax
import jax.numpy as jnp
from jax.experimental import pallas as pl
from jax.experimental.pallas import tpu as pltpu


# (fan_in, fan_out) for each of the 6 Linear layers, encoder then decoder.
LAYER_DIMS = [(44, 36), (36, 24), (24, 18), (18, 24), (24, 36), (36, 44)]
IN_DIM = 44
OUT_DIM = 44


def ae_kernel(x_ref, w_ref, b_ref, o_ref):
    """Fused autoencoder forward: one (tm,44)x(44,44) matmul + bias add."""
    o_ref[...] = (
        jnp.dot(x_ref[...], w_ref[...], preferred_element_type=jnp.float32)
        + b_ref[...]
    ).astype(o_ref.dtype)


def init_params(key):
    """Deterministic init mimicking torch.nn.Linear default U(-1/sqrt(in), 1/sqrt(in))."""
    params = []
    for fan_in, fan_out in LAYER_DIMS:
        key, kw, kb = jax.random.split(key, 3)
        bound = 1.0 / math.sqrt(fan_in)
        w = jax.random.uniform(kw, (fan_in, fan_out),
                               minval=-bound, maxval=bound, dtype=jnp.float32)
        b = jax.random.uniform(kb, (1, fan_out),
                               minval=-bound, maxval=bound, dtype=jnp.float32)
        params.append((w, b))
    return params


def compose_params(params):
    """Collapse the 6 affine layers into one (44,44) weight and (1,44) bias.

    h = x@W0 + b0; h = h@W1 + b1; ...  =>  W = W0@W1@...; b = ((b0@W1+b1)@W2+b2)...
    Exact algebra; only reorders floating-point ops (~1e-6 rel. difference).
    Call ONCE at init time; do not re-run per forward call.
    """
    (w, b), rest = params[0], params[1:]
    for wi, bi in rest:
        w = w @ wi
        b = b @ wi + bi
    return w, b


def _round_up(n, m):
    return ((n + m - 1) // m) * m


def _pick_tile(batch, tile_m):
    """Row tile: multiple of 8 (f32 sublane), <= tile_m (VMEM cap), and small
    enough that the grid has >=2 steps when possible (v7x megacore)."""
    tm = max(8, _round_up(pl.cdiv(batch, 2), 8))
    return min(tile_m, tm)


@functools.partial(jax.jit, static_argnames=("tile_m",))
def ae_forward(x, w, b, tile_m=4096):
    """Fused forward pass: single matmul kernel, gridded over the batch dim.

    `w`, `b` are the pre-composed (44,44) / (1,44) parameters from
    compose_params(); composition is intentionally NOT done here.
    """
    batch = x.shape[0]
    tm = _pick_tile(batch, tile_m)
    grid = (pl.cdiv(batch, tm),)

    # Bandwidth-bound hint for XLA's scheduler.
    bytes_accessed = 4 * (batch * IN_DIM          # read x
                          + IN_DIM * OUT_DIM      # read composed weight
                          + OUT_DIM               # read composed bias
                          + batch * OUT_DIM)      # write y
    cost = pl.CostEstimate(
        flops=2 * batch * IN_DIM * OUT_DIM,
        transcendentals=0,
        bytes_accessed=bytes_accessed,
    )

    return pl.pallas_call(
        ae_kernel,
        out_shape=jax.ShapeDtypeStruct((batch, OUT_DIM), jnp.float32),
        grid=grid,
        in_specs=[
            # Activations: one (tm, 44) block per grid step (double-buffered);
            # ragged last block is bounds-masked by Pallas (no jnp.pad pass).
            pl.BlockSpec((tm, IN_DIM), lambda i: (i, 0)),
            # Composed weight & bias: same block every step -> VMEM-resident.
            pl.BlockSpec((IN_DIM, OUT_DIM), lambda i: (0, 0)),
            pl.BlockSpec((1, OUT_DIM), lambda i: (0, 0)),
        ],
        out_specs=pl.BlockSpec((tm, OUT_DIM), lambda i: (i, 0)),
        # Batch axis is independent -> let v7x shard it across both TCs.
        compiler_params=pltpu.CompilerParams(
            dimension_semantics=("parallel",),
        ),
        cost_estimate=cost,
        # VMEM footprint at tm=4096: 2 bufs * (in+out) * 4096 * 128 lanes * 4B
        # ~= 8 MiB -> fits every generation's scoped default; no override.
    )(x, w, b)


def ae_forward_ref(x, params):
    """Pure-JAX layer-by-layer reference (matches the PyTorch module)."""
    h = x
    for w, b in params:
        h = h @ w + b
    return h


if __name__ == "__main__":
    key = jax.random.PRNGKey(0)
    key, kx1, kx2 = jax.random.split(key, 3)
    params = init_params(key)
    # Compose ONCE at init time (outside the jitted hot path).
    w_comp, b_comp = compose_params(params)
    w_comp = jax.block_until_ready(w_comp)
    b_comp = jax.block_until_ready(b_comp)

    # Small batch (single grid step).
    batch = 8
    x = jax.random.normal(kx1, (batch, IN_DIM), dtype=jnp.float32)
    out = jax.block_until_ready(ae_forward(x, w_comp, b_comp))
    ref = ae_forward_ref(x, params)
    assert out.shape == (batch, OUT_DIM), out.shape
    assert jnp.allclose(out, ref, atol=1e-4, rtol=1e-4), \
        "mismatch vs reference (small batch)"

    # Larger, non-multiple batch: exercises multi-step grid + ragged last block.
    batch2 = 1029
    x2 = jax.random.normal(kx2, (batch2, IN_DIM), dtype=jnp.float32)
    out2 = jax.block_until_ready(ae_forward(x2, w_comp, b_comp))
    ref2 = ae_forward_ref(x2, params)
    assert out2.shape == (batch2, OUT_DIM), out2.shape
    assert jnp.allclose(out2, ref2, atol=1e-4, rtol=1e-4), \
        "mismatch vs reference (large batch)"

    print("KERNEL_OK")
</pallas_src>

<mosaic_0001>
module attributes {stable_mosaic.version = 11 : i64} {
  func.func @ae_kernel(%arg0: i32, %arg1: memref<8x44xf32, #tpu.memory_space<vmem>>, %arg2: memref<44x44xf32, #tpu.memory_space<vmem>>, %arg3: memref<1x44xf32, #tpu.memory_space<vmem>>, %arg4: memref<8x44xf32, #tpu.memory_space<vmem>>) attributes {dimension_semantics = [#tpu.dimension_semantics<parallel>], iteration_bounds = array<i64: 1>, scalar_prefetch = 0 : i64, scratch_operands = 0 : i64, tpu.core_type = #tpu.core_type<tc>, window_params = [{transform_indices = @transform_0, window_bounds = array<i64: 8, 44>}, {pipeline_mode = #tpu.pipeline_mode<synchronous>, transform_indices = @transform_1, window_bounds = array<i64: 44, 44>}, {pipeline_mode = #tpu.pipeline_mode<synchronous>, transform_indices = @transform_2, window_bounds = array<i64: 1, 44>}, {transform_indices = @transform_3, window_bounds = array<i64: 8, 44>}]} {
    %c0 = arith.constant 0 : index
    %c0_0 = arith.constant 0 : index
    %0 = vector.load %arg1[%c0, %c0_0] : memref<8x44xf32, #tpu.memory_space<vmem>>, vector<8x44xf32>
    %c0_1 = arith.constant 0 : index
    %c0_2 = arith.constant 0 : index
    %1 = vector.load %arg2[%c0_1, %c0_2] : memref<44x44xf32, #tpu.memory_space<vmem>>, vector<44x44xf32>
    %cst = arith.constant dense<0.000000e+00> : vector<8x44xf32>
    %2 = tpu.matmul %0, %1, %cst {dimension_numbers = #tpu.dot_dimension_numbers<[1], [0], [0], [1], [0, 0, 1, 1], [], []>} : vector<8x44xf32>, vector<44x44xf32>, vector<8x44xf32> -> vector<8x44xf32>
    %c0_3 = arith.constant 0 : index
    %c0_4 = arith.constant 0 : index
    %3 = vector.load %arg3[%c0_3, %c0_4] : memref<1x44xf32, #tpu.memory_space<vmem>>, vector<1x44xf32>
    %4 = vector.broadcast %3 : vector<1x44xf32> to vector<8x44xf32>
    %5 = arith.addf %2, %4 : vector<8x44xf32>
    %c0_5 = arith.constant 0 : index
    %c0_6 = arith.constant 0 : index
    %6 = vector.load %arg4[%c0_5, %c0_6] : memref<8x44xf32, #tpu.memory_space<vmem>>, vector<8x44xf32>
    tpu.vector_store %arg4[%c0_5, %c0_6], %5 {strides = array<i32>} : memref<8x44xf32, #tpu.memory_space<vmem>>, vector<8x44xf32>,
    return
  }
  func.func @transform_0(%arg0: i32) -> (i32, i32) {
    %c0_i32 = arith.constant 0 : i32
    %c0_i32_0 = arith.constant 0 : i32
    return %arg0, %c0_i32 : i32, i32
  }
  func.func @transform_1(%arg0: i32) -> (i32, i32) {
    %c0_i32 = arith.constant 0 : i32
    %c0_i32_0 = arith.constant 0 : i32
    %c0_i32_1 = arith.constant 0 : i32
    return %c0_i32, %c0_i32_0 : i32, i32
  }
  func.func @transform_2(%arg0: i32) -> (i32, i32) {
    %c0_i32 = arith.constant 0 : i32
    %c0_i32_0 = arith.constant 0 : i32
    %c0_i32_1 = arith.constant 0 : i32
    return %c0_i32, %c0_i32_0 : i32, i32
  }
  func.func @transform_3(%arg0: i32) -> (i32, i32) {
    %c0_i32 = arith.constant 0 : i32
    %c0_i32_0 = arith.constant 0 : i32
    return %arg0, %c0_i32 : i32, i32
  }
}

</mosaic_0001>

<llo_original>
// kernel: ae_forward.1
$region0: #{ae_forward.1}
  #allocation0 [shape = 'u32[]', space=smem, size = 0x4, offset = 0x4, fixed_abs, tag = 'smem constant byte address 0x4 - core index']
  #allocation1 [shape = 'u32[144,128]{1,0:T(1,128)}', space=vmem, size = 0x12000, scoped, tag = 'internal scratch']
  %s0 = inlined_call_operand.hbm [shape: f32[8,44], index: 0, kind: input, shape index: {}]
  %s1 = inlined_call_operand.hbm [shape: f32[44,44], index: 1, kind: input, shape index: {}]
  %s2 = inlined_call_operand.vmem [shape: f32[1,44], index: 2, kind: input, shape index: {}]
  %s3 = inlined_call_operand.hbm [shape: f32[8,44], index: 3, kind: output, shape index: {}]
  %s4 = sld [smem:[#allocation0]]
  $region30: #{ae_forward.1} parent=0
    _
  %s6 = ssub.s32 1, %s4
  %s7 = scalar_select 0, %s6, %s4
  $region1: #{ae_forward.1} parent=0
    #allocation2 [shape = 'u8[4096]{0}', space=vmem, size = 0x1000, scoped, tag = 'input window, operand 0, single buffered']
    #allocation3 [shape = 's32[1]{0}', space=sflag, size = 0x4, scoped, tag = 'scoped memory for ae_forward.1']
    #allocation4 [shape = 's32[1]{0}', space=sflag, size = 0x4, scoped, tag = 'scoped memory for ae_forward.1']
    #allocation5 [shape = 'u8[24576]{0}', space=vmem, size = 0x6000, scoped, tag = 'input window, operand 1, single buffered']
    #allocation6 [shape = 's32[1]{0}', space=sflag, size = 0x4, scoped, tag = 'scoped memory for ae_forward.1']
    #allocation7 [shape = 'u8[4096]{0}', space=vmem, size = 0x1000, scoped, tag = 'output window, operand 0, single buffered']
    %8 = vsyncpa [#allocation3], 0
    %9 = vsyncpa [#allocation6], 0
    %10 = vsyncpa [#allocation4], 0
    // Predicated region
    $region2: #{ae_forward.1} parent=1 // pred_check
      _
    $region3: #{ae_forward.1} parent=1 // pred_check_branch
      %12 = sbr.rel (0) target = $region5
    $region4: #{ae_forward.1} parent=1 // pred_region
      %s14 = ssub.s32 128, 128
      %15 = vsyncadd [#allocation3], %s14
      %s17 = sshll.u32 [#allocation2], 4
      %s18 = int_to_ptr.vmem [resolvable:$true] %s17
      %20 = dma.hbm_to_vmem [thread:$0]  %s0, 128, %s18, [#allocation3]
    $region5: #{ae_forward.1} parent=1 // pred_fallthru
      _
    // Predicated region
    $region6: #{ae_forward.1} parent=1 // pred_check
      _
    $region7: #{ae_forward.1} parent=1 // pred_check_branch
      %22 = sbr.rel (0) target = $region9
    $region8: #{ae_forward.1} parent=1 // pred_region
      %s24 = ssub.s32 768, 768
      %25 = vsyncadd [#allocation6], %s24
      %s26 = sshll.u32 [#allocation5], 4
      %s27 = int_to_ptr.vmem [resolvable:$true] %s26
      %32 = dma.hbm_to_vmem [thread:$0]  %s1, 768, %s27, [#allocation6], 128, 128, 8
    $region9: #{ae_forward.1} parent=1 // pred_fallthru
      _
    // Predicated region
    $region10: #{ae_forward.1} parent=1 // pred_check
      _
    $region11: #{ae_forward.1} parent=1 // pred_check_branch
      %34 = sbr.rel (0) target = $region13
    $region12: #{ae_forward.1} parent=1 // pred_region
      _
    $region13: #{ae_forward.1} parent=1 // pred_fallthru
      _
    // Predicated region
    $region14: #{ae_forward.1} parent=1 // pred_check
      _
    $region15: #{ae_forward.1} parent=1 // pred_check_branch
      %36 = sbr.rel (0) target = $region17
    $region16: #{ae_forward.1} parent=1 // pred_region
      %37 = dma.done [#allocation3], 128
    $region17: #{ae_forward.1} parent=1 // pred_fallthru
      _
    // Predicated region
    $region18: #{ae_forward.1} parent=1 // pred_check
      _
    $region19: #{ae_forward.1} parent=1 // pred_check_branch
      %39 = sbr.rel (0) target = $region21
    $region20: #{ae_forward.1} parent=1 // pred_region
      %40 = dma.done [#allocation6], 768
    $region21: #{ae_forward.1} parent=1 // pred_fallthru
      _
    %v41 = vld [vmem:[#allocation2] sm:$0xff]
    %v42 = vld [vmem:[#allocation5] sm:$0xff]
    %v43 = vld [vmem:[#allocation5 + $0x8] sm:$0xff]
    %v44 = vld [vmem:[#allocation5 + $0x10] sm:$0xff]
    %v45 = vld [vmem:[#allocation5 + $0x18] sm:$0xff]
    %v46 = vld [vmem:[#allocation5 + $0x20] sm:$0xff]
    %v47 = vld [vmem:[#allocation5 + $0x28] sm:$0xf]
    %v48 = vld [vmem:[%s2] sm:$0x1]
    %v50 = vlaneseq
    %v51 = vshrl.u32 %v50, 7
    %v52 = vsub.s32 0, %v51
    %v53 = vrot.slane %v48, %v52
    %vm55 = vcmask 359424
    %v57 = vsel %vm55, %v41, 0
    %vm59 = vcmask 1043456
    %v61 = vsel %vm59, %v47, 0
    %63 = vmatprep.subr.mxu0 0.0
    %64 = vmatpush1.msra.mxu0 %v42
    %65 = vmatprep.subr.mxu0 0.0
    %66 = vmatpush1.msra.mxu0 %v43
    %67 = vmatprep.subr.mxu0 0.0
    %68 = vmatpush1.msra.mxu0 %v44
    %69 = vmatprep.subr.mxu0 0.0
    %70 = vmatpush1.msra.mxu0 %v45
    %71 = vmatprep.subr.mxu0 0.0
    %72 = vmatpush1.msra.mxu0 %v46
    %73 = vmatprep.subr.mxu0 0.0
    %74 = vmatpush1.msra.mxu0 %v61
    %75 = vmatprep.subr.mxu0 0.0
    %76 = vmatpush1.msra.mxu0 0.0
    %77 = vmatprep.subr.mxu0 0.0
    %78 = vmatpush1.msra.mxu0 0.0
    %79 = vmatprep.subr.mxu0 0.0
    %80 = vmatpush1.msra.mxu0 0.0
    %81 = vmatprep.subr.mxu0 0.0
    %82 = vmatpush1.msra.mxu0 0.0
    %83 = vmatprep.subr.mxu0 0.0
    %84 = vmatpush1.msra.mxu0 0.0
    %85 = vmatprep.subr.mxu0 0.0
    %86 = vmatpush1.msra.mxu0 0.0
    %87 = vmatprep.subr.mxu0 0.0
    %88 = vmatpush1.msra.mxu0 0.0
    %89 = vmatprep.subr.mxu0 0.0
    %90 = vmatpush1.msra.mxu0 0.0
    %91 = vmatprep.subr.mxu0 0.0
    %92 = vmatpush1.msra.mxu0 0.0
    %93 = vmatprep.subr.mxu0 0.0
    %94 = vmatpush1.msra.mxu0 0.0
    %95 = vmatprep.subr.mxu0 0.0
    %96 = vmatpush1.msra.mxu0 0.0
    %97 = vmatprep.subr.mxu0 0.0
    %98 = vmatpush1.msra.mxu0 0.0
    %99 = vmatprep.subr.mxu0 0.0
    %100 = vmatpush1.msra.mxu0 0.0
    %101 = vmatprep.subr.mxu0 0.0
    %102 = vmatpush1.msra.mxu0 0.0
    %103 = vmatprep.subr.mxu0 0.0
    %104 = vmatpush1.msra.mxu0 0.0
    %105 = vmatprep.subr.mxu0 0.0
    %106 = vmatpush1.msra.mxu0 0.0
    %107 = vmatprep.subr.mxu0 0.0
    %108 = vmatpush1.msra.mxu0 0.0
    %109 = vmatprep.subr.mxu0 0.0
    %110 = vmatpush1.msra.mxu0 0.0
    %111 = vmatprep.subr.mxu0 0.0
    %112 = vmatpush1.msra.mxu0 0.0
    %113 = vmatprep.subr.mxu0 0.0
    %114 = vmatpush1.msra.mxu0 0.0
    %115 = vmatprep.subr.mxu0 0.0
    %116 = vmatpush1.msra.mxu0 0.0
    %117 = vmatprep.subr.mxu0 0.0
    %118 = vmatpush1.msra.mxu0 0.0
    %119 = vmatprep.subr.mxu0 0.0
    %120 = vmatpush1.msra.mxu0 0.0
    %121 = vmatprep.subr.mxu0 0.0
    %122 = vmatpush1.msra.mxu0 0.0
    %123 = vmatprep.subr.mxu0 0.0
    %124 = vmatpush1.msra.mxu0 0.0
    %125 = vmatprep.subr.mxu0 0.0
    %126 = vmatpush1.msra.mxu0 0.0
    %127 = vmatprep.mubr.f32.mxu0 0.0
    %128 = vmatmul.mubr.f32.gmra.mrb[0].mxu0 %v57
    %v129 = vpop.f32.mrb[0].mxu0
    %v130 = vadd.f32 %v53, %v129
    %v131 = vpop.f32.mrb[0].mxu0
    %132 = vdwg.mxu0
    %133 = vst.msk [vmem:[#allocation7] sm:$0xff] %vm55, %v130
    // Predicated region
    $region22: #{ae_forward.1} parent=1 // pred_check
      _
    $region23: #{ae_forward.1} parent=1 // pred_check_branch
      %135 = sbr.rel (0) target = $region25
    $region24: #{ae_forward.1} parent=1 // pred_region
      %s137 = ssub.s32 128, 128
      %138 = vsyncadd [#allocation4], %s137
      %s140 = sshll.u32 [#allocation7], 4
      %s141 = int_to_ptr.vmem [resolvable:$true] %s140
      %143 = dma.vmem_to_hbm [thread:$0]  %s141, 128, %s3, [#allocation4]
    $region25: #{ae_forward.1} parent=1 // pred_fallthru
      _
    // Predicated region
    $region26: #{ae_forward.1} parent=1 // pred_check
      _
    $region27: #{ae_forward.1} parent=1 // pred_check_branch
      %145 = sbr.rel (0) target = $region29
    $region28: #{ae_forward.1} parent=1 // pred_region
      %146 = dma.done [#allocation4], 128
    $region29: #{ae_forward.1} parent=1 // pred_fallthru
      _
    %147 = vsyncpa [#allocation3], 1
    %148 = vsyncpa [#allocation6], 1
    %149 = vsyncpa [#allocation4], 1

</llo_original>
